<compile_context>
chip_gen: v6e
topology: v6e:2x2x1
jax: 0.10.0
libtpu: 0.0.40
codegen_flags: <defaults>
</compile_context>

<pallas_src>
import functools

import jax
import jax.numpy as jnp
from jax import lax
from jax.experimental import pallas as pl
from jax.experimental.pallas import tpu as pltpu


def _round_up(x, m):
    return ((x + m - 1) // m) * m


def _critic_kernel(x_ref, w1_ref, b1_ref, w2_ref, b2_ref, w3_ref, b3_ref,
                   out_ref, *, chunk, n_chunks):
    # Weights / biases: loaded once per grid step, hoisted out of the chunk loop.
    w1 = w1_ref[...]      # (H, K)   K = state_dim + action_dim
    b1 = b1_ref[...]      # (H, 1)
    w2 = w2_ref[...]      # (H, H)
    b2 = b2_ref[...]      # (H, 1)
    w3 = w3_ref[...]      # (H, 1)
    b3 = b3_ref[0]        # scalar (SMEM)

    def compute(x):
        # x: (K, C) feature-major, batch on the 128-lane axis.
        h1 = lax.dot_general(w1, x, (((1,), (0,)), ((), ())),
                             preferred_element_type=jnp.float32) + b1
        h1 = jnp.maximum(h1, 0.0)                                   # (H, C)
        h2 = jnp.dot(w2, h1, preferred_element_type=jnp.float32) + b2
        h2 = jnp.maximum(h2, 0.0)                                   # (H, C)
        # 32 -> 1: VPU multiply + cross-sublane (XLU) reduce, not an N=1 MXU matmul.
        return jnp.sum(h2 * w3, axis=0, keepdims=True) + b3          # (1, C)

    if n_chunks == 1:
        out_ref[...] = compute(x_ref[...]).astype(out_ref.dtype)
    else:
        # Large DMA tile, small compute chunks: keeps vreg pressure of the
        # (H, chunk) f32 intermediates bounded while amortizing step overhead.
        def body(c, carry):
            off = pl.multiple_of(c * chunk, 128)
            q = compute(x_ref[:, pl.ds(off, chunk)])
            out_ref[:, pl.ds(off, chunk)] = q.astype(out_ref.dtype)
            return carry

        lax.fori_loop(0, n_chunks, body, 0, unroll=True)


def critic_forward(state, action, params, *, block_b=2048, chunk=512):
    """state: (B, state_dim) f32, action: (B, action_dim) f32 -> (B, 1) f32."""
    w1, b1, w2, b2, w3, b3 = params
    B, S = state.shape
    A = action.shape[1]
    K = S + A
    H = w2.shape[0]
    assert w1.shape == (H, K)

    # ---- batch tile selection -------------------------------------------------
    if B <= 128:
        tb, b_pad = B, B                     # single step, full-array block
    else:
        # Guarantee >= 2 grid steps so both v7x TensorCores get work; tile is
        # lane-aligned and capped at block_b (step-overhead vs vreg tradeoff).
        tb = min(_round_up(block_b, 128), _round_up(pl.cdiv(B, 2), 128))
        b_pad = _round_up(B, tb)

    # Inner lane-chunk size; tb is a multiple of 128 in the gridded path.
    if tb <= chunk:
        chunk_size, n_chunks = tb, 1
    else:
        chunk_size = chunk
        while tb % chunk_size:
            chunk_size //= 2
        n_chunks = tb // chunk_size

    # ---- one small fused wrapper copy: lane-dense feature-major input slab ----
    # concat + transpose + tail pad fuse into a single (K, b_pad) copy; padded
    # tail columns are discarded by the final slice.
    x = jnp.concatenate([state, action], axis=1).T          # (K, B)
    if b_pad != B:
        x = jnp.pad(x, ((0, 0), (0, b_pad - B)))

    grid = (b_pad // tb,)
    const = lambda i: (0, 0)   # weights/biases: same block every step -> resident

    kernel = functools.partial(_critic_kernel, chunk=chunk_size, n_chunks=n_chunks)

    out = pl.pallas_call(
        kernel,
        out_shape=jax.ShapeDtypeStruct((1, b_pad), jnp.float32),
        grid=grid,
        in_specs=[
            pl.BlockSpec((K, tb), lambda i: (0, i)),             # x (batch on lanes)
            pl.BlockSpec((H, K), const),                         # W1 (merged)
            pl.BlockSpec((H, 1), const),                         # b1 column
            pl.BlockSpec((H, H), const),                         # W2
            pl.BlockSpec((H, 1), const),                         # b2 column
            pl.BlockSpec((H, 1), const),                         # W3 column
            pl.BlockSpec(memory_space=pltpu.MemorySpace.SMEM),   # b3 scalar
        ],
        out_specs=pl.BlockSpec((1, tb), lambda i: (0, i)),       # lane-dense store
        compiler_params=pltpu.CompilerParams(
            dimension_semantics=("parallel",),                   # v7x: 2 TensorCores
        ),
    )(x, w1, b1, w2, b2, w3, b3)

    return out[0, :B].reshape(B, 1)


def init_critic_params(key, state_dim, action_dim, hidden=32):
    """Mimics PyTorch nn.Linear default init (U[-1/sqrt(fan_in), +1/sqrt(fan_in)]).

    Weights are stored (out_features, in_features); the kernel's batch-on-lane
    layout computes W · x with a feature-major x, so no transposes are needed
    in the kernel and cat([state, action]) @ W1.T is a single W1 @ x matmul."""
    def linear(k, fan_in, fan_out):
        kw, kb = jax.random.split(k)
        bound = 1.0 / jnp.sqrt(jnp.float32(fan_in))
        w = jax.random.uniform(kw, (fan_out, fan_in), jnp.float32, -bound, bound)
        b = jax.random.uniform(kb, (fan_out,), jnp.float32, -bound, bound)
        return w, b

    k1, k2, k3 = jax.random.split(key, 3)
    w1, b1 = linear(k1, state_dim + action_dim, hidden)
    w2, b2 = linear(k2, hidden, hidden)
    w3, b3 = linear(k3, hidden, 1)
    return (w1,                         # (H, S+A)
            b1.reshape(hidden, 1),      # (H, 1)
            w2,                         # (H, H)
            b2.reshape(hidden, 1),      # (H, 1)
            w3.reshape(hidden, 1),      # (H, 1)
            b3.reshape(1,))             # scalar bias, lives in SMEM (1,)


def critic_reference(state, action, params):
    """Pure-JAX reference identical to the PyTorch Critic.forward."""
    w1, b1, w2, b2, w3, b3 = params
    x = jnp.concatenate([state, action], axis=1)          # (B, S+A)
    h1 = jnp.maximum(x @ w1.T + b1[:, 0], 0.0)
    h2 = jnp.maximum(h1 @ w2.T + b2[:, 0], 0.0)
    return h2 @ w3 + b3                                   # (B, 1)


if __name__ == "__main__":
    key = jax.random.PRNGKey(0)
    (k_params, k_s1, k_a1, k_s2, k_a2, k_s3, k_a3) = jax.random.split(key, 7)

    state_dim, action_dim = 8, 4
    params = init_critic_params(k_params, state_dim, action_dim)

    # 1) Small-shape check (single grid step, full-array blocks).
    batch = 2
    state = jax.random.normal(k_s1, (batch, state_dim), jnp.float32)
    action = jax.random.normal(k_a1, (batch, action_dim), jnp.float32)
    q = critic_forward(state, action, params)
    jax.block_until_ready(q)
    q_ref = critic_reference(state, action, params)
    assert q.shape == (batch, 1)
    assert jnp.allclose(q, q_ref, atol=1e-5, rtol=1e-5), (q, q_ref)

    # 2) Gridded path with ragged B (tb=256, grid=(2,), tail padded in-slab).
    batch2 = 300
    state2 = jax.random.normal(k_s2, (batch2, state_dim), jnp.float32)
    action2 = jax.random.normal(k_a2, (batch2, action_dim), jnp.float32)
    q2 = critic_forward(state2, action2, params)
    jax.block_until_ready(q2)
    q2_ref = critic_reference(state2, action2, params)
    assert q2.shape == (batch2, 1)
    assert jnp.allclose(q2, q2_ref, atol=1e-5, rtol=1e-5)

    # 3) Large-tile path (tb=2048, 4 inner 512-lane chunks per step, grid=(2,)).
    batch3 = 4096
    state3 = jax.random.normal(k_s3, (batch3, state_dim), jnp.float32)
    action3 = jax.random.normal(k_a3, (batch3, action_dim), jnp.float32)
    q3 = critic_forward(state3, action3, params)
    jax.block_until_ready(q3)
    q3_ref = critic_reference(state3, action3, params)
    assert q3.shape == (batch3, 1)
    assert jnp.allclose(q3, q3_ref, atol=1e-5, rtol=1e-5)

    print("KERNEL_OK")
</pallas_src>

<mosaic_0001>
module attributes {stable_mosaic.version = 11 : i64} {
  func.func @_critic_kernel(%arg0: i32, %arg1: memref<12x2xf32, #tpu.memory_space<vmem>>, %arg2: memref<32x12xf32, #tpu.memory_space<vmem>>, %arg3: memref<32x1xf32, #tpu.memory_space<vmem>>, %arg4: memref<32x32xf32, #tpu.memory_space<vmem>>, %arg5: memref<32x1xf32, #tpu.memory_space<vmem>>, %arg6: memref<32x1xf32, #tpu.memory_space<vmem>>, %arg7: memref<1xf32, #tpu.memory_space<smem>>, %arg8: memref<1x2xf32, #tpu.memory_space<vmem>>) attributes {dimension_semantics = [#tpu.dimension_semantics<parallel>], iteration_bounds = array<i64: 1>, scalar_prefetch = 0 : i64, scratch_operands = 0 : i64, tpu.core_type = #tpu.core_type<tc>, window_params = [{transform_indices = @transform_0, window_bounds = array<i64: 12, 2>}, {pipeline_mode = #tpu.pipeline_mode<synchronous>, transform_indices = @transform_1, window_bounds = array<i64: 32, 12>}, {pipeline_mode = #tpu.pipeline_mode<synchronous>, transform_indices = @transform_2, window_bounds = array<i64: 32, 1>}, {pipeline_mode = #tpu.pipeline_mode<synchronous>, transform_indices = @transform_3, window_bounds = array<i64: 32, 32>}, {pipeline_mode = #tpu.pipeline_mode<synchronous>, transform_indices = @transform_4, window_bounds = array<i64: 32, 1>}, {pipeline_mode = #tpu.pipeline_mode<synchronous>, transform_indices = @transform_5, window_bounds = array<i64: 32, 1>}, {transform_indices = @transform_6, window_bounds = array<i64: 1>}, {transform_indices = @transform_7, window_bounds = array<i64: 1, 2>}]} {
    %c0 = arith.constant 0 : index
    %c0_0 = arith.constant 0 : index
    %0 = vector.load %arg2[%c0, %c0_0] : memref<32x12xf32, #tpu.memory_space<vmem>>, vector<32x12xf32>
    %c0_1 = arith.constant 0 : index
    %c0_2 = arith.constant 0 : index
    %1 = vector.load %arg3[%c0_1, %c0_2] : memref<32x1xf32, #tpu.memory_space<vmem>>, vector<32x1xf32>
    %c0_3 = arith.constant 0 : index
    %c0_4 = arith.constant 0 : index
    %2 = vector.load %arg4[%c0_3, %c0_4] : memref<32x32xf32, #tpu.memory_space<vmem>>, vector<32x32xf32>
    %c0_5 = arith.constant 0 : index
    %c0_6 = arith.constant 0 : index
    %3 = vector.load %arg5[%c0_5, %c0_6] : memref<32x1xf32, #tpu.memory_space<vmem>>, vector<32x1xf32>
    %c0_7 = arith.constant 0 : index
    %c0_8 = arith.constant 0 : index
    %4 = vector.load %arg6[%c0_7, %c0_8] : memref<32x1xf32, #tpu.memory_space<vmem>>, vector<32x1xf32>
    %c0_9 = arith.constant 0 : index
    %5 = memref.load %arg7[%c0_9] : memref<1xf32, #tpu.memory_space<smem>>
    %c0_10 = arith.constant 0 : index
    %c0_11 = arith.constant 0 : index
    %6 = vector.load %arg1[%c0_10, %c0_11] : memref<12x2xf32, #tpu.memory_space<vmem>>, vector<12x2xf32>
    %cst = arith.constant dense<0.000000e+00> : vector<32x2xf32>
    %7 = tpu.matmul %0, %6, %cst {dimension_numbers = #tpu.dot_dimension_numbers<[1], [0], [0], [1], [0, 0, 1, 1], [], []>} : vector<32x12xf32>, vector<12x2xf32>, vector<32x2xf32> -> vector<32x2xf32>
    %8 = vector.broadcast %1 : vector<32x1xf32> to vector<32x2xf32>
    %9 = arith.addf %7, %8 : vector<32x2xf32>
    %cst_12 = arith.constant 0.000000e+00 : f32
    %10 = vector.broadcast %cst_12 : f32 to vector<32x2xf32>
    %11 = arith.maximumf %9, %10 : vector<32x2xf32>
    %cst_13 = arith.constant dense<0.000000e+00> : vector<32x2xf32>
    %12 = tpu.matmul %2, %11, %cst_13 {dimension_numbers = #tpu.dot_dimension_numbers<[1], [0], [0], [1], [0, 0, 1, 1], [], []>} : vector<32x32xf32>, vector<32x2xf32>, vector<32x2xf32> -> vector<32x2xf32>
    %13 = vector.broadcast %3 : vector<32x1xf32> to vector<32x2xf32>
    %14 = arith.addf %12, %13 : vector<32x2xf32>
    %cst_14 = arith.constant 0.000000e+00 : f32
    %15 = vector.broadcast %cst_14 : f32 to vector<32x2xf32>
    %16 = arith.maximumf %14, %15 : vector<32x2xf32>
    %17 = vector.broadcast %4 : vector<32x1xf32> to vector<32x2xf32>
    %18 = arith.mulf %16, %17 : vector<32x2xf32>
    %cst_15 = arith.constant dense<0.000000e+00> : vector<2xf32>
    %19 = vector.multi_reduction <add>, %18, %cst_15 [0] : vector<32x2xf32> to vector<2xf32>
    %20 = vector.shape_cast %19 : vector<2xf32> to vector<1x2xf32>
    %21 = vector.broadcast %5 : f32 to vector<1x2xf32>
    %22 = arith.addf %20, %21 : vector<1x2xf32>
    %c0_16 = arith.constant 0 : index
    %c0_17 = arith.constant 0 : index
    %23 = vector.load %arg8[%c0_16, %c0_17] : memref<1x2xf32, #tpu.memory_space<vmem>>, vector<1x2xf32>
    tpu.vector_store %arg8[%c0_16, %c0_17], %22 {strides = array<i32>} : memref<1x2xf32, #tpu.memory_space<vmem>>, vector<1x2xf32>,
    return
  }
  func.func @transform_0(%arg0: i32) -> (i32, i32) {
    %c0_i32 = arith.constant 0 : i32
    %c0_i32_0 = arith.constant 0 : i32
    return %c0_i32, %arg0 : i32, i32
  }
  func.func @transform_1(%arg0: i32) -> (i32, i32) {
    %c0_i32 = arith.constant 0 : i32
    %c0_i32_0 = arith.constant 0 : i32
    %c0_i32_1 = arith.constant 0 : i32
    return %c0_i32, %c0_i32_0 : i32, i32
  }
  func.func @transform_2(%arg0: i32) -> (i32, i32) {
    %c0_i32 = arith.constant 0 : i32
    %c0_i32_0 = arith.constant 0 : i32
    %c0_i32_1 = arith.constant 0 : i32
    return %c0_i32, %c0_i32_0 : i32, i32
  }
  func.func @transform_3(%arg0: i32) -> (i32, i32) {
    %c0_i32 = arith.constant 0 : i32
    %c0_i32_0 = arith.constant 0 : i32
    %c0_i32_1 = arith.constant 0 : i32
    return %c0_i32, %c0_i32_0 : i32, i32
  }
  func.func @transform_4(%arg0: i32) -> (i32, i32) {
    %c0_i32 = arith.constant 0 : i32
    %c0_i32_0 = arith.constant 0 : i32
    %c0_i32_1 = arith.constant 0 : i32
    return %c0_i32, %c0_i32_0 : i32, i32
  }
  func.func @transform_5(%arg0: i32) -> (i32, i32) {
    %c0_i32 = arith.constant 0 : i32
    %c0_i32_0 = arith.constant 0 : i32
    %c0_i32_1 = arith.constant 0 : i32
    return %c0_i32, %c0_i32_0 : i32, i32
  }
  func.func @transform_6(%arg0: i32) -> i32 {
    %c0_i32 = arith.constant 0 : i32
    %c0_i32_0 = arith.constant 0 : i32
    return %c0_i32 : i32
  }
  func.func @transform_7(%arg0: i32) -> (i32, i32) {
    %c0_i32 = arith.constant 0 : i32
    %c0_i32_0 = arith.constant 0 : i32
    return %c0_i32, %arg0 : i32, i32
  }
}

</mosaic_0001>

<llo_original>
// kernel: tpu_custom_call.1
$region0: #{tpu_custom_call.1}
  #allocation0 [shape = 'u32[]', space=smem, size = 0x4, offset = 0x4, fixed_abs, tag = 'smem constant byte address 0x4 - core index']
  #allocation1 [shape = 'u32[144,128]{1,0:T(1,128)}', space=vmem, size = 0x12000, scoped, tag = 'internal scratch']
  #allocation2 [shape = 'f32[1]{0:T(128)S(6)}', space=smem, size = 0x200, scoped, tag = 'scoped memory for tpu_custom_call.1']
  %s0 = inlined_call_operand.vmem [shape: f32[12,2], index: 0, kind: input, shape index: {}]
  %s1 = inlined_call_operand.vmem [shape: f32[32,12], index: 1, kind: input, shape index: {}]
  %s2 = inlined_call_operand.vmem [shape: f32[32,1], index: 2, kind: input, shape index: {}]
  %s3 = inlined_call_operand.vmem [shape: f32[32,32], index: 3, kind: input, shape index: {}]
  %s4 = inlined_call_operand.vmem [shape: f32[32,1], index: 4, kind: input, shape index: {}]
  %s5 = inlined_call_operand.vmem [shape: f32[32,1], index: 5, kind: input, shape index: {}]
  %s6 = inlined_call_operand.<no memory space> [shape: f32[1], index: 6, kind: input, shape index: {}]
  %s7 = inlined_call_operand.hbm [shape: f32[1,2], index: 7, kind: output, shape index: {}]
  %s8 = sld [smem:[#allocation0]]
  $region38: #{tpu_custom_call.1} parent=0
    _
  %s10 = ssub.s32 1, %s8
  %s11 = scalar_select 0, %s10, %s8
  %12 = sst [smem:[#allocation2]] %s6
  $region1: #{tpu_custom_call.1} parent=0
    #allocation3 [shape = 'u8[512]{0}', space=vmem, size = 0x400, scoped, tag = 'output window, operand 0, single buffered']
    #allocation4 [shape = 's32[1]{0}', space=sflag, size = 0x4, scoped, tag = 'scoped memory for tpu_custom_call.1']
    %13 = vsyncpa [#allocation4], 0
    // Predicated region
    $region2: #{tpu_custom_call.1} parent=1 // pred_check
      _
    $region3: #{tpu_custom_call.1} parent=1 // pred_check_branch
      %15 = sbr.rel (0) target = $region5
    $region4: #{tpu_custom_call.1} parent=1 // pred_region
      _
    $region5: #{tpu_custom_call.1} parent=1 // pred_fallthru
      _
    // Predicated region
    $region6: #{tpu_custom_call.1} parent=1 // pred_check
      _
    $region7: #{tpu_custom_call.1} parent=1 // pred_check_branch
      %17 = sbr.rel (0) target = $region9
    $region8: #{tpu_custom_call.1} parent=1 // pred_region
      _
    $region9: #{tpu_custom_call.1} parent=1 // pred_fallthru
      _
    // Predicated region
    $region10: #{tpu_custom_call.1} parent=1 // pred_check
      _
    $region11: #{tpu_custom_call.1} parent=1 // pred_check_branch
      %19 = sbr.rel (0) target = $region13
    $region12: #{tpu_custom_call.1} parent=1 // pred_region
      _
    $region13: #{tpu_custom_call.1} parent=1 // pred_fallthru
      _
    // Predicated region
    $region14: #{tpu_custom_call.1} parent=1 // pred_check
      _
    $region15: #{tpu_custom_call.1} parent=1 // pred_check_branch
      %21 = sbr.rel (0) target = $region17
    $region16: #{tpu_custom_call.1} parent=1 // pred_region
      _
    $region17: #{tpu_custom_call.1} parent=1 // pred_fallthru
      _
    // Predicated region
    $region18: #{tpu_custom_call.1} parent=1 // pred_check
      _
    $region19: #{tpu_custom_call.1} parent=1 // pred_check_branch
      %23 = sbr.rel (0) target = $region21
    $region20: #{tpu_custom_call.1} parent=1 // pred_region
      _
    $region21: #{tpu_custom_call.1} parent=1 // pred_fallthru
      _
    // Predicated region
    $region22: #{tpu_custom_call.1} parent=1 // pred_check
      _
    $region23: #{tpu_custom_call.1} parent=1 // pred_check_branch
      %25 = sbr.rel (0) target = $region25
    $region24: #{tpu_custom_call.1} parent=1 // pred_region
      _
    $region25: #{tpu_custom_call.1} parent=1 // pred_fallthru
      _
    // Predicated region
    $region26: #{tpu_custom_call.1} parent=1 // pred_check
      _
    $region27: #{tpu_custom_call.1} parent=1 // pred_check_branch
      %27 = sbr.rel (0) target = $region29
    $region28: #{tpu_custom_call.1} parent=1 // pred_region
      _
    $region29: #{tpu_custom_call.1} parent=1 // pred_fallthru
      _
    %v28 = vld [vmem:[%s1] sm:$0xff]
    %v29 = vld [vmem:[%s1 + $0x8] sm:$0xff]
    %v30 = vld [vmem:[%s1 + $0x10] sm:$0xff]
    %v31 = vld [vmem:[%s1 + $0x18] sm:$0xff]
    %v32 = vld [vmem:[%s2] sm:$0xff]
    %v33 = vld [vmem:[%s2 + $0x8] sm:$0xff]
    %v34 = vld [vmem:[%s2 + $0x10] sm:$0xff]
    %v35 = vld [vmem:[%s2 + $0x18] sm:$0xff]
    %v36 = vld [vmem:[%s3] sm:$0xff]
    %v37 = vld [vmem:[%s3 + $0x8] sm:$0xff]
    %v38 = vld [vmem:[%s3 + $0x10] sm:$0xff]
    %v39 = vld [vmem:[%s3 + $0x18] sm:$0xff]
    %v40 = vld [vmem:[%s4] sm:$0xff]
    %v41 = vld [vmem:[%s4 + $0x8] sm:$0xff]
    %v42 = vld [vmem:[%s4 + $0x10] sm:$0xff]
    %v43 = vld [vmem:[%s4 + $0x18] sm:$0xff]
    %v44 = vld [vmem:[%s5] sm:$0xff]
    %v45 = vld [vmem:[%s5 + $0x8] sm:$0xff]
    %v46 = vld [vmem:[%s5 + $0x10] sm:$0xff]
    %v47 = vld [vmem:[%s5 + $0x18] sm:$0xff]
    %s48 = sld [smem:[#allocation2]]
    %v49 = vld [vmem:[%s0] sm:$0xff]
    %v50 = vld [vmem:[%s0 + $0x8] sm:$0xf]
    %52 = vset.pattern.permute.xlu0 0
    %53 = vperm.xlu0 %52, %v32
    %v54 = vpop.permute.xlu0 %53
    %57 = vset.pattern.permute.xlu0 0
    %58 = vperm.xlu0 %57, %v33
    %v59 = vpop.permute.xlu0 %58
    %62 = vset.pattern.permute.xlu0 0
    %63 = vperm.xlu0 %62, %v34
    %v64 = vpop.permute.xlu0 %63
    %67 = vset.pattern.permute.xlu0 0
    %68 = vperm.xlu0 %67, %v35
    %v69 = vpop.permute.xlu0 %68
    %vm71 = vcmask 97280
    %v73 = vsel %vm71, %v28, 0
    %v76 = vsel %vm71, %v29, 0
    %v79 = vsel %vm71, %v30, 0
    %v82 = vsel %vm71, %v31, 0
    %vm84 = vcmask 1043456
    %v86 = vsel %vm84, %v50, 0
    %88 = vmatprep.subr.mxu0 0.0
    %89 = vmatpush1.msra.mxu0 0.0
    %90 = vmatprep.subr.mxu0 0.0
    %91 = vmatpush1.msra.mxu0 0.0
    %92 = vmatprep.subr.mxu0 0.0
    %93 = vmatpush1.msra.mxu0 0.0
    %94 = vmatprep.subr.mxu0 0.0
    %95 = vmatpush1.msra.mxu0 0.0
    %96 = vmatprep.subr.mxu0 0.0
    %97 = vmatpush1.msra.mxu0 0.0
    %98 = vmatprep.subr.mxu0 0.0
    %99 = vmatpush1.msra.mxu0 0.0
    %100 = vmatprep.subr.mxu0 0.0
    %101 = vmatpush1.msra.mxu0 0.0
    %102 = vmatprep.subr.mxu0 0.0
    %103 = vmatpush1.msra.mxu0 0.0
    %104 = vmatprep.subr.mxu0 0.0
    %105 = vmatpush1.msra.mxu0 0.0
    %106 = vmatprep.subr.mxu0 0.0
    %107 = vmatpush1.msra.mxu0 0.0
    %108 = vmatprep.subr.mxu0 0.0
    %109 = vmatpush1.msra.mxu0 0.0
    %110 = vmatprep.subr.mxu0 0.0
    %111 = vmatpush1.msra.mxu0 0.0
    %112 = vmatprep.subr.mxu0 0.0
    %113 = vmatpush1.msra.mxu0 0.0
    %114 = vmatprep.subr.mxu0 0.0
    %115 = vmatpush1.msra.mxu0 0.0
    %116 = vmatprep.subr.mxu0 0.0
    %117 = vmatpush1.msra.mxu0 %v86
    %118 = vmatprep.subr.mxu0 0.0
    %119 = vmatpush1.msra.mxu0 %v49
    %120 = vmatprep.subr.mxu0 0.0
    %121 = vmatpush2.msra.mxu0 0.0
    %122 = vmatprep.subr.mxu0 0.0
    %123 = vmatpush2.msra.mxu0 0.0
    %124 = vmatprep.subr.mxu0 0.0
    %125 = vmatpush2.msra.mxu0 0.0
    %126 = vmatprep.subr.mxu0 0.0
    %127 = vmatpush2.msra.mxu0 0.0
    %128 = vmatprep.subr.mxu0 0.0
    %129 = vmatpush2.msra.mxu0 0.0
    %130 = vmatprep.subr.mxu0 0.0
    %131 = vmatpush2.msra.mxu0 0.0
    %132 = vmatprep.subr.mxu0 0.0
    %133 = vmatpush2.msra.mxu0 0.0
    %134 = vmatprep.subr.mxu0 0.0
    %135 = vmatpush2.msra.mxu0 0.0
    %136 = vmatprep.subr.mxu0 0.0
    %137 = vmatpush2.msra.mxu0 0.0
    %138 = vmatprep.subr.mxu0 0.0
    %139 = vmatpush2.msra.mxu0 0.0
    %140 = vmatprep.subr.mxu0 0.0
    %141 = vmatpush2.msra.mxu0 0.0
    %142 = vmatprep.subr.mxu0 0.0
    %143 = vmatpush2.msra.mxu0 0.0
    %144 = vmatprep.subr.mxu0 0.0
    %145 = vmatpush2.msra.mxu0 0.0
    %146 = vmatprep.subr.mxu0 0.0
    %147 = vmatpush2.msra.mxu0 0.0
    %148 = vmatprep.subr.mxu0 0.0
    %149 = vmatpush2.msra.mxu0 0.0
    %150 = vmatprep.subr.mxu0 0.0
    %151 = vmatpush2.msra.mxu0 0.0
    %152 = vmatprep.mubr.f32.mxu0 0.0
    %153 = vmatmul.mubr.f32.gmra.mxu0 %v73
    %v154 = vpop.f32.mrf.mxu0
    %v155 = vadd.f32 %v54, %v154
    %v156 = vpop.f32.mrf.mxu0
    %157 = vmatprep.mubr.f32.mxu0 0.0
    %158 = vmatmul.mubr.f32.gmra.mxu0 %v76
    %v159 = vpop.f32.mrf.mxu0
    %v160 = vadd.f32 %v59, %v159
    %v161 = vpop.f32.mrf.mxu0
    %162 = vmatprep.mubr.f32.mxu0 0.0
    %163 = vmatmul.mubr.f32.gmra.mxu0 %v79
    %v164 = vpop.f32.mrf.mxu0
    %v165 = vadd.f32 %v64, %v164
    %v166 = vpop.f32.mrf.mxu0
    %167 = vmatprep.mubr.f32.mxu0 0.0
    %168 = vmatmul.mubr.f32.gmra.mxu0 %v82
    %v169 = vpop.f32.mrf.mxu0
    %v170 = vadd.f32 %v69, %v169
    %v171 = vpop.f32.mrf.mxu0
    %172 = vdwg.mxu0
    %v173 = vmax.f32 %v155, 0.0
    %v174 = vmax.f32 %v160, 0.0
    %v175 = vmax.f32 %v165, 0.0
    %v176 = vmax.f32 %v170, 0.0
    %178 = vset.pattern.permute.xlu0 0
    %179 = vperm.xlu0 %178, %v40
    %v180 = vpop.permute.xlu0 %179
    %183 = vset.pattern.permute.xlu0 0
    %184 = vperm.xlu0 %183, %v41
    %v185 = vpop.permute.xlu0 %184
    %188 = vset.pattern.permute.xlu0 0
    %189 = vperm.xlu0 %188, %v42
    %v190 = vpop.permute.xlu0 %189
    %193 = vset.pattern.permute.xlu0 0
    %194 = vperm.xlu0 %193, %v43
    %v195 = vpop.permute.xlu0 %194
    %vm197 = vcmask 261120
    %v199 = vsel %vm197, %v36, 0
    %v202 = vsel %vm197, %v37, 0
    %v205 = vsel %vm197, %v38, 0
    %v208 = vsel %vm197, %v39, 0
    %210 = vmatprep.subr.mxu0 0.0
    %211 = vmatpush1.msra.mxu0 0.0
    %212 = vmatprep.subr.mxu0 0.0
    %213 = vmatpush1.msra.mxu0 0.0
    %214 = vmatprep.subr.mxu0 0.0
    %215 = vmatpush1.msra.mxu0 0.0
    %216 = vmatprep.subr.mxu0 0.0
    %217 = vmatpush1.msra.mxu0 0.0
    %218 = vmatprep.subr.mxu0 0.0
    %219 = vmatpush1.msra.mxu0 0.0
    %220 = vmatprep.subr.mxu0 0.0
    %221 = vmatpush1.msra.mxu0 0.0
    %222 = vmatprep.subr.mxu0 0.0
    %223 = vmatpush1.msra.mxu0 0.0
    %224 = vmatprep.subr.mxu0 0.0
    %225 = vmatpush1.msra.mxu0 0.0
    %226 = vmatprep.subr.mxu0 0.0
    %227 = vmatpush1.msra.mxu0 0.0
    %228 = vmatprep.subr.mxu0 0.0
    %229 = vmatpush1.msra.mxu0 0.0
    %230 = vmatprep.subr.mxu0 0.0
    %231 = vmatpush1.msra.mxu0 0.0
    %232 = vmatprep.subr.mxu0 0.0
    %233 = vmatpush1.msra.mxu0 0.0
    %234 = vmatprep.subr.mxu0 0.0
    %235 = vmatpush1.msra.mxu0 %v176
    %236 = vmatprep.subr.mxu0 0.0
    %237 = vmatpush1.msra.mxu0 %v175
    %238 = vmatprep.subr.mxu0 0.0
    %239 = vmatpush1.msra.mxu0 %v174
    %240 = vmatprep.subr.mxu0 0.0
    %241 = vmatpush1.msra.mxu0 %v173
    %242 = vmatprep.subr.mxu0 0.0
    %243 = vmatpush2.msra.mxu0 0.0
    %244 = vmatprep.subr.mxu0 0.0
    %245 = vmatpush2.msra.mxu0 0.0
    %246 = vmatprep.subr.mxu0 0.0
    %247 = vmatpush2.msra.mxu0 0.0
    %248 = vmatprep.subr.mxu0 0.0
    %249 = vmatpush2.msra.mxu0 0.0
    %250 = vmatprep.subr.mxu0 0.0
    %251 = vmatpush2.msra.mxu0 0.0
    %252 = vmatprep.subr.mxu0 0.0
    %253 = vmatpush2.msra.mxu0 0.0
    %254 = vmatprep.subr.mxu0 0.0
    %255 = vmatpush2.msra.mxu0 0.0
    %256 = vmatprep.subr.mxu0 0.0
    %257 = vmatpush2.msra.mxu0 0.0
    %258 = vmatprep.subr.mxu0 0.0
    %259 = vmatpush2.msra.mxu0 0.0
    %260 = vmatprep.subr.mxu0 0.0
    %261 = vmatpush2.msra.mxu0 0.0
    %262 = vmatprep.subr.mxu0 0.0
    %263 = vmatpush2.msra.mxu0 0.0
    %264 = vmatprep.subr.mxu0 0.0
    %265 = vmatpush2.msra.mxu0 0.0
    %266 = vmatprep.subr.mxu0 0.0
    %267 = vmatpush2.msra.mxu0 0.0
    %268 = vmatprep.subr.mxu0 0.0
    %269 = vmatpush2.msra.mxu0 0.0
    %270 = vmatprep.subr.mxu0 0.0
    %271 = vmatpush2.msra.mxu0 0.0
    %272 = vmatprep.subr.mxu0 0.0
    %273 = vmatpush2.msra.mxu0 0.0
    %274 = vmatprep.mubr.f32.mxu0 0.0
    %275 = vmatmul.mubr.f32.gmra.mxu0 %v199
    %v276 = vpop.f32.mrf.mxu0
    %v277 = vadd.f32 %v180, %v276
    %v278 = vpop.f32.mrf.mxu0
    %279 = vmatprep.mubr.f32.mxu0 0.0
    %280 = vmatmul.mubr.f32.gmra.mxu0 %v202
    %v281 = vpop.f32.mrf.mxu0
    %v282 = vadd.f32 %v185, %v281
    %v283 = vpop.f32.mrf.mxu0
    %284 = vmatprep.mubr.f32.mxu0 0.0
    %285 = vmatmul.mubr.f32.gmra.mxu0 %v205
    %v286 = vpop.f32.mrf.mxu0
    %v287 = vadd.f32 %v190, %v286
    %v288 = vpop.f32.mrf.mxu0
    %289 = vmatprep.mubr.f32.mxu0 0.0
    %290 = vmatmul.mubr.f32.gmra.mxu0 %v208
    %v291 = vpop.f32.mrf.mxu0
    %v292 = vadd.f32 %v195, %v291
    %v293 = vpop.f32.mrf.mxu0
    %294 = vdwg.mxu0
    %v295 = vmax.f32 %v277, 0.0
    %v296 = vmax.f32 %v282, 0.0
    %v297 = vmax.f32 %v287, 0.0
    %v298 = vmax.f32 %v292, 0.0
    %300 = vset.pattern.permute.xlu0 0
    %301 = vperm.xlu0 %300, %v44
    %v302 = vpop.permute.xlu0 %301
    %305 = vset.pattern.permute.xlu0 0
    %306 = vperm.xlu0 %305, %v45
    %v307 = vpop.permute.xlu0 %306
    %310 = vset.pattern.permute.xlu0 0
    %311 = vperm.xlu0 %310, %v46
    %v312 = vpop.permute.xlu0 %311
    %315 = vset.pattern.permute.xlu0 0
    %316 = vperm.xlu0 %315, %v47
    %v317 = vpop.permute.xlu0 %316
    %v319 = vmul.f32 %v295, %v302
    %v320 = vmul.f32 %v296, %v307
    %v321 = vmul.f32 %v297, %v312
    %v322 = vmul.f32 %v298, %v317
    %vm323 = vcmask 15360
    %v324 = vsel %vm323, %v319, 0.0
    %v325 = vsel %vm323, %v320, 0.0
    %v326 = vadd.f32 %v324, %v325
    %v327 = vsel %vm323, %v321, 0.0
    %v328 = vadd.f32 %v326, %v327
    %v329 = vsel %vm323, %v322, 0.0
    %v330 = vadd.f32 %v328, %v329
    %v331 = vrot.slane %v330, 4
    %v332 = vadd.f32 %v330, %v331
    %v333 = vrot.slane %v332, 2
    %v334 = vadd.f32 %v332, %v333
    %v335 = vrot.slane %v334, 1
    %v336 = vadd.f32 %v334, %v335
    %v337 = vstv %s48
    %v338 = vadd.f32 %v336, %v337
    %vm339 = vcmask 8192
    %340 = vst.msk [vmem:[#allocation3] sm:$0x1] %vm339, %v338
    // Predicated region
    $region30: #{tpu_custom_call.1} parent=1 // pred_check
      _
    $region31: #{tpu_custom_call.1} parent=1 // pred_check_branch
      %342 = sbr.rel (0) target = $region33
    $region32: #{tpu_custom_call.1} parent=1 // pred_region
      %s344 = ssub.s32 16, 16
      %345 = vsyncadd [#allocation4], %s344
      %s347 = sshll.u32 [#allocation3], 4
      %s348 = int_to_ptr.vmem [resolvable:$true] %s347
      %350 = dma.vmem_to_hbm [thread:$0]  %s348, 16, %s7, [#allocation4]
    $region33: #{tpu_custom_call.1} parent=1 // pred_fallthru
      _
    // Predicated region
    $region34: #{tpu_custom_call.1} parent=1 // pred_check
      _
    $region35: #{tpu_custom_call.1} parent=1 // pred_check_branch
      %352 = sbr.rel (0) target = $region37
    $region36: #{tpu_custom_call.1} parent=1 // pred_region
      %353 = dma.done [#allocation4], 16
    $region37: #{tpu_custom_call.1} parent=1 // pred_fallthru
      _
    %354 = vsyncpa [#allocation4], 1

</llo_original>
